<compile_context>
chip_gen: v7x
topology: tpu7x:2x2x1
jax: 0.10.0
libtpu: 0.0.40
codegen_flags: <defaults>
</compile_context>

<pallas_src>
import functools

import jax
import jax.numpy as jnp
from jax import lax
from jax.experimental import pallas as pl
from jax.experimental.pallas import tpu as pltpu


def _silu(x):
    return x * jax.nn.sigmoid(x)


def _group_norm(y, gamma, beta, G, eps=1e-5):
    """GroupNorm over a (N, C) tile (N = H*W spatial axis), two-pass mean/var."""
    N, C = y.shape
    cg = C // G
    inv_n = 1.0 / N
    mean_c = jnp.sum(y, axis=0, keepdims=True) * inv_n            # per-channel mean (1, C)
    if cg > 1:
        mean_g = jnp.mean(mean_c.reshape(G, cg), axis=1, keepdims=True)
        mean_c = jnp.broadcast_to(mean_g, (G, cg)).reshape(1, C)
    d = y - mean_c
    var_c = jnp.sum(d * d, axis=0, keepdims=True) * inv_n         # per-channel var of centered
    if cg > 1:
        var_g = jnp.mean(var_c.reshape(G, cg), axis=1, keepdims=True)
        var_c = jnp.broadcast_to(var_g, (G, cg)).reshape(1, C)
    return d * lax.rsqrt(var_c + eps) * gamma + beta


def _ghost_res_kernel(x_ref, t_ref, mask_ref, w1_ref, w2_ref,
                      g1_ref, b1_ref, g2_ref, b2_ref, out_ref, *,
                      Cm, G, use_shortcut, shifts):
    xf = x_ref[0]                      # (HW, C1)   spatially-flattened NHWC input
    tm = mask_ref[...]                 # (HW, 9)    per-tap validity masks (k = dy*3+dx)
    w1 = w1_ref[...]                   # (9*C1, Cm) dense 3x3 weight, im2col layout
    w2 = w2_ref[...]                   # (9, Cm)    depthwise 3x3 weight

    # Hoisted per-tap boundary-mask lane slices, shared by conv1 and conv2.
    msk = [None if k == 4 else tm[:, k:k + 1] for k in range(9)]

    def tap(v, k):
        # dy,dx-shifted copy of v with zero 'same' padding: XLU roll along the
        # flattened spatial (sublane) axis; the mask both emulates the zero pad
        # and zeroes the roll wrap-around positions (they coincide).
        s = shifts[k]
        sv = v if s == 0 else pltpu.roll(v, s, 0)
        if k == 4:                     # centre tap: every position is valid
            return sv
        return sv * msk[k]

    # ---- conv1: dense 3x3 as ONE MXU matmul (K = 9*C1) ----
    cols = jnp.concatenate([tap(xf, k) for k in range(9)], axis=-1)   # (HW, 9*C1)
    acc1 = jnp.dot(cols.astype(w1.dtype), w1, preferred_element_type=jnp.float32)

    # ---- GroupNorm + SiLU + temb (projection precomputed in the wrapper) ----
    x1 = _silu(_group_norm(acc1, g1_ref[...], b1_ref[...], G)) + t_ref[0]

    # ---- conv2: depthwise 3x3, scratch-free (9 roll+mask multiply-adds, VPU) ----
    acc2 = x1 * w2[4:5, :]
    for k in (0, 1, 2, 3, 5, 6, 7, 8):
        acc2 = acc2 + tap(x1, k) * w2[k:k + 1, :]
    x2 = _silu(_group_norm(acc2, g2_ref[...], b2_ref[...], G))

    # ---- shortcut + direct writes of the two channel halves (no concat temp) ----
    if use_shortcut:                   # only valid when C1 == 2*Cm
        x1 = x1 + xf[:, :Cm]
        x2 = x2 + xf[:, Cm:]
    out_ref[0, :, :Cm] = x1.astype(out_ref.dtype)
    out_ref[0, :, Cm:] = x2.astype(out_ref.dtype)


_ROLL_IS_JNP_LIKE = None


def _roll_is_jnp_like():
    """One-time probe (cached): does pltpu.roll move elements toward higher
    indices for a positive shift (i.e. match jnp.roll)? Run once, eagerly."""
    global _ROLL_IS_JNP_LIKE
    if _ROLL_IS_JNP_LIKE is None:
        def k(x_ref, o_ref):
            o_ref[...] = pltpu.roll(x_ref[...], 1, 0)
        x = jnp.arange(8 * 128, dtype=jnp.int32).reshape(8, 128)
        out = pl.pallas_call(k, out_shape=jax.ShapeDtypeStruct((8, 128), jnp.int32))(x)
        _ROLL_IS_JNP_LIKE = bool(out[1, 0] == 0)   # jnp.roll: out[1,0] == x[0,0] == 0
    return _ROLL_IS_JNP_LIKE


def init_params(key, c1, c2, tdim, ratio=0.5):
    c_ = int(c2 * ratio)
    ks = jax.random.split(key, 8)
    return dict(
        w1=0.1 * jax.random.normal(ks[0], (c_, c1, 3, 3), jnp.float32),  # Conv2d OIHW
        w2=0.1 * jax.random.normal(ks[1], (c_, 1, 3, 3), jnp.float32),   # depthwise OIHW
        g1=1.0 + 0.1 * jax.random.normal(ks[2], (c_,), jnp.float32),     # GroupNorm weight
        b1=0.1 * jax.random.normal(ks[3], (c_,), jnp.float32),
        g2=1.0 + 0.1 * jax.random.normal(ks[4], (c_,), jnp.float32),
        b2=0.1 * jax.random.normal(ks[5], (c_,), jnp.float32),
        wt=0.1 * jax.random.normal(ks[6], (c_, tdim), jnp.float32),      # Linear (out, in)
        bt=0.1 * jax.random.normal(ks[7], (c_,), jnp.float32),
    )


def ghost_res_block(x_nchw, temb, params, shortcut=True, matmul_dtype=None):
    """Fused GhostResBlock forward. x_nchw: (B, C1, H, W); temb: (B, tdim)."""
    B, C1, H, W = x_nchw.shape
    Cm = params["w1"].shape[0]
    C2 = 2 * Cm
    HW = H * W
    G = min(32, Cm)
    use_shortcut = bool(shortcut) and (C1 == C2)

    # ---- parameter packing (layout glue, plain JAX) ----
    # OIHW -> (k*C1 + cin, cout) with k = ky*3 + kx, matching the im2col lane order.
    w1 = jnp.transpose(params["w1"], (2, 3, 1, 0)).reshape(9 * C1, Cm)
    if matmul_dtype is not None:        # e.g. jnp.bfloat16 on v6e/v7x; accum stays f32
        w1 = w1.astype(matmul_dtype)
    w2 = jnp.transpose(params["w2"][:, 0], (1, 2, 0)).reshape(9, Cm)
    g1 = params["g1"].reshape(1, Cm)
    b1 = params["b1"].reshape(1, Cm)
    g2 = params["g2"].reshape(1, Cm)
    b2 = params["b2"].reshape(1, Cm)

    # ---- temb projection hoisted out of the kernel (one batched XLA matmul) ----
    tproj = (_silu(temb) @ params["wt"].T + params["bt"]).astype(jnp.float32)
    tproj = tproj.reshape(B, 1, Cm)

    # ---- input: NCHW -> spatially-flattened NHWC rows (HW, C1) ----
    x_flat = jnp.transpose(x_nchw, (0, 2, 3, 1)).reshape(B, HW, C1)

    # ---- per-tap boundary masks (HW, 9): 1 where (r+dy-1, c+dx-1) is inside ----
    rr = jnp.arange(H, dtype=jnp.float32)
    cc = jnp.arange(W, dtype=jnp.float32)
    masks = []
    for dy in range(3):
        rv = jnp.ones((H,), jnp.float32)
        if dy == 0:
            rv = (rr >= 1).astype(jnp.float32)
        elif dy == 2:
            rv = (rr <= H - 2).astype(jnp.float32)
        for dx in range(3):
            cv = jnp.ones((W,), jnp.float32)
            if dx == 0:
                cv = (cc >= 1).astype(jnp.float32)
            elif dx == 2:
                cv = (cc <= W - 2).astype(jnp.float32)
            masks.append((rv[:, None] * cv[None, :]).reshape(HW))
    tap_masks = jnp.stack(masks, axis=-1)                                 # (HW, 9)

    # ---- static roll shifts: tap k reads flat position p + off_k ----
    jnp_like = _roll_is_jnp_like()
    offs = [(dy - 1) * W + (dx - 1) for dy in range(3) for dx in range(3)]
    shifts = tuple(((-o) % HW) if jnp_like else (o % HW) for o in offs)

    kernel = functools.partial(_ghost_res_kernel, Cm=Cm, G=G,
                               use_shortcut=use_shortcut, shifts=shifts)

    def const_spec(shape):
        return pl.BlockSpec(shape, lambda b, _n=len(shape): (0,) * _n)

    out_flat = pl.pallas_call(
        kernel,
        out_shape=jax.ShapeDtypeStruct((B, HW, C2), x_nchw.dtype),
        grid_spec=pltpu.PrefetchScalarGridSpec(
            num_scalar_prefetch=0,
            grid=(B,),
            in_specs=[
                pl.BlockSpec((1, HW, C1), lambda b: (b, 0, 0)),   # x (flattened NHWC)
                pl.BlockSpec((1, 1, Cm), lambda b: (b, 0, 0)),    # temb projection
                const_spec((HW, 9)),                              # tap masks
                const_spec((9 * C1, Cm)),                         # w1 (im2col layout)
                const_spec((9, Cm)),                              # w2 (depthwise)
                const_spec((1, Cm)),                              # g1
                const_spec((1, Cm)),                              # b1
                const_spec((1, Cm)),                              # g2
                const_spec((1, Cm)),                              # b2
            ],
            out_specs=pl.BlockSpec((1, HW, C2), lambda b: (b, 0, 0)),
        ),
        # Batch items are independent -> megacore sharding on v7x; harmless elsewhere.
        compiler_params=pltpu.CompilerParams(
            dimension_semantics=("parallel",)),
        # TODO(synk): for large Cm / HW add a second "parallel" grid axis over
        # channel blocks (multiple of 128 lanes and of Cm//G) to bound VMEM, and
        # raise vmem_limit_bytes / single-buffer the constant-parameter specs.
    )(x_flat, tproj, tap_masks, w1, w2, g1, b1, g2, b2)

    out = out_flat.reshape(B, H, W, C2)
    return jnp.transpose(out, (0, 3, 1, 2))            # back to NCHW (PyTorch layout)


def ghost_res_block_ref(x, temb, params, shortcut=True, eps=1e-5):
    """Pure-JAX reference mirroring the PyTorch forward."""
    B, C1, H, W = x.shape
    Cm = params["w1"].shape[0]
    G = min(32, Cm)
    use_shortcut = bool(shortcut) and (C1 == 2 * Cm)

    def gn(y, gamma, beta):
        Bc, C, Hh, Ww = y.shape
        yr = y.reshape(Bc, G, C // G, Hh, Ww)
        mean = yr.mean(axis=(2, 3, 4), keepdims=True)
        var = ((yr - mean) ** 2).mean(axis=(2, 3, 4), keepdims=True)
        yn = ((yr - mean) * lax.rsqrt(var + eps)).reshape(Bc, C, Hh, Ww)
        return yn * gamma[None, :, None, None] + beta[None, :, None, None]

    silu = lambda v: v * jax.nn.sigmoid(v)

    y = lax.conv_general_dilated(x, params["w1"], (1, 1), ((1, 1), (1, 1)),
                                 dimension_numbers=("NCHW", "OIHW", "NCHW"))
    x1 = silu(gn(y, params["g1"], params["b1"]))
    t = silu(temb) @ params["wt"].T + params["bt"]
    x1 = x1 + t[:, :, None, None]

    y2 = lax.conv_general_dilated(x1, params["w2"], (1, 1), ((1, 1), (1, 1)),
                                  dimension_numbers=("NCHW", "OIHW", "NCHW"),
                                  feature_group_count=Cm)
    x2 = silu(gn(y2, params["g2"], params["b2"]))
    out = jnp.concatenate([x1, x2], axis=1)
    if use_shortcut:
        out = out + x
    return out


if __name__ == "__main__":
    key = jax.random.PRNGKey(0)
    k_x, k_t, k_p = jax.random.split(key, 3)
    B, C1, C2, H, W, TDIM = 2, 8, 8, 16, 16, 16   # c_ = int(C2 * 0.5) = 4
    x = jax.random.normal(k_x, (B, C1, H, W), jnp.float32)
    temb = jax.random.normal(k_t, (B, TDIM), jnp.float32)
    params = init_params(k_p, C1, C2, TDIM, ratio=0.5)

    out = jax.block_until_ready(ghost_res_block(x, temb, params, shortcut=True))
    ref = jax.block_until_ready(ghost_res_block_ref(x, temb, params, shortcut=True))

    assert out.shape == (B, C2, H, W), out.shape
    err = float(jnp.max(jnp.abs(out - ref)))
    assert err < 2e-3, f"max abs err {err}"
    print("KERNEL_OK")
</pallas_src>

<mosaic_0001>
module attributes {stable_mosaic.version = 11 : i64} {
  func.func @k(%arg0: memref<8x128xi32, #tpu.memory_space<vmem>>, %arg1: memref<8x128xi32, #tpu.memory_space<vmem>>) attributes {dimension_semantics = [], scalar_prefetch = 0 : i64, scratch_operands = 0 : i64, tpu.core_type = #tpu.core_type<tc>} {
    %c0 = arith.constant 0 : index
    %c0_0 = arith.constant 0 : index
    %0 = vector.load %arg0[%c0, %c0_0] : memref<8x128xi32, #tpu.memory_space<vmem>>, vector<8x128xi32>
    %c1_i32 = arith.constant 1 : i32
    %1 = tpu.dynamic_rotate %0 by %c1_i32 dim 0 : vector<8x128xi32>, i32 -> vector<8x128xi32>
    %c0_1 = arith.constant 0 : index
    %c0_2 = arith.constant 0 : index
    %2 = vector.load %arg1[%c0_1, %c0_2] : memref<8x128xi32, #tpu.memory_space<vmem>>, vector<8x128xi32>
    tpu.vector_store %arg1[%c0_1, %c0_2], %1 {strides = array<i32>} : memref<8x128xi32, #tpu.memory_space<vmem>>, vector<8x128xi32>,
    return
  }
}

</mosaic_0001>

<llo_original>
// kernel: tpu_custom_call.1
$region0: #{tpu_custom_call.1}
  #allocation0 [shape = 'u32[]', space=smem, size = 0x4, offset = 0x4, fixed_abs, tag = 'smem constant byte address 0x4 - core index']
  #allocation1 [shape = 'u32[144,128]{1,0:T(1,128)}', space=vmem, size = 0x12000, scoped, tag = 'internal scratch']
  %s0 = inlined_call_operand.hbm [shape: s32[8,128], index: 0, kind: input, shape index: {}]
  %s1 = inlined_call_operand.hbm [shape: s32[8,128], index: 1, kind: output, shape index: {}]
  %s2 = sld [smem:[#allocation0]]
  $region18: #{tpu_custom_call.1} parent=0
    _
  %s4 = ssub.s32 1, %s2
  %s5 = scalar_select 0, %s4, %s2
  $region1: #{tpu_custom_call.1} parent=0
    #allocation2 [shape = 'u8[4096]{0}', space=vmem, size = 0x1000, scoped, tag = 'input window, operand 0, single buffered']
    #allocation3 [shape = 's32[1]{0}', space=sflag, size = 0x4, scoped, tag = 'scoped memory for tpu_custom_call.1']
    #allocation4 [shape = 's32[1]{0}', space=sflag, size = 0x4, scoped, tag = 'scoped memory for tpu_custom_call.1']
    #allocation5 [shape = 'u8[4096]{0}', space=vmem, size = 0x1000, scoped, tag = 'output window, operand 0, single buffered']
    %6 = vsyncpa [#allocation3], 0
    %7 = vsyncpa [#allocation4], 0
    // Predicated region
    $region2: #{tpu_custom_call.1} parent=1 // pred_check
      _
    $region3: #{tpu_custom_call.1} parent=1 // pred_check_branch
      %9 = sbr.rel (0) target = $region5
    $region4: #{tpu_custom_call.1} parent=1 // pred_region
      %s11 = ssub.s32 128, 128
      %12 = vsyncadd [#allocation3], %s11
      %s14 = sshll.u32 [#allocation2], 4
      %s15 = int_to_ptr.vmem [resolvable:$true] %s14
      %17 = dma.hbm_to_vmem [thread:$0]  %s0, 128, %s15, [#allocation3]
    $region5: #{tpu_custom_call.1} parent=1 // pred_fallthru
      _
    // Predicated region
    $region6: #{tpu_custom_call.1} parent=1 // pred_check
      _
    $region7: #{tpu_custom_call.1} parent=1 // pred_check_branch
      %19 = sbr.rel (0) target = $region9
    $region8: #{tpu_custom_call.1} parent=1 // pred_region
      %20 = dma.done [#allocation3], 128
    $region9: #{tpu_custom_call.1} parent=1 // pred_fallthru
      _
    %v21 = vld [vmem:[#allocation2] sm:$0xff]
    %v22 = vrot.slane %v21, 7
    %23 = vst [vmem:[#allocation5] sm:$0xff] %v22
    // Predicated region
    $region10: #{tpu_custom_call.1} parent=1 // pred_check
      _
    $region11: #{tpu_custom_call.1} parent=1 // pred_check_branch
      %25 = sbr.rel (0) target = $region13
    $region12: #{tpu_custom_call.1} parent=1 // pred_region
      %s27 = ssub.s32 128, 128
      %28 = vsyncadd [#allocation4], %s27
      %s30 = sshll.u32 [#allocation5], 4
      %s31 = int_to_ptr.vmem [resolvable:$true] %s30
      %33 = dma.vmem_to_hbm [thread:$0]  %s31, 128, %s1, [#allocation4]
    $region13: #{tpu_custom_call.1} parent=1 // pred_fallthru
      _
    // Predicated region
    $region14: #{tpu_custom_call.1} parent=1 // pred_check
      _
    $region15: #{tpu_custom_call.1} parent=1 // pred_check_branch
      %35 = sbr.rel (0) target = $region17
    $region16: #{tpu_custom_call.1} parent=1 // pred_region
      %36 = dma.done [#allocation4], 128
    $region17: #{tpu_custom_call.1} parent=1 // pred_fallthru
      _
    %37 = vsyncpa [#allocation3], 1
    %38 = vsyncpa [#allocation4], 1

</llo_original>
